<compile_context>
chip_gen: v5e
topology: v5e:2x2
jax: 0.10.0
libtpu: 0.0.40
codegen_flags: <defaults>
</compile_context>

<pallas_src>
import math

import jax
import jax.numpy as jnp
from jax import lax
from jax.experimental import pallas as pl
from jax.experimental.pallas import tpu as pltpu


def _sad_cos_kernel(x_ref, t_ref, cos_ref):
    # x_ref / t_ref: (TILE_N, B) — native layout, spectra on sublanes,
    # bands on lanes.  Reductions are lane reduces (XLU), hidden under DMA.
    x = x_ref[...].astype(jnp.float32)
    t = t_ref[...].astype(jnp.float32)

    s_xx = jnp.sum(x * x, axis=-1, keepdims=True)   # (TILE_N, 1)
    s_tt = jnp.sum(t * t, axis=-1, keepdims=True)   # (TILE_N, 1)
    s_xt = jnp.sum(x * t, axis=-1, keepdims=True)   # (TILE_N, 1)

    # <x,t> / (||x|| * ||t||)  ==  <x,t> * rsqrt(<x,x> * <t,t>)
    cos = s_xt * lax.rsqrt(s_xx * s_tt)
    # Clamp: protects the downstream arccos from |cos| exceeding 1 by a few
    # ULPs when x ~= t (only divergence from the reference is that FP corner).
    cos_ref[...] = jnp.clip(cos, -1.0, 1.0).astype(cos_ref.dtype)


def _round_up(x, m):
    return ((x + m - 1) // m) * m


def sad(inp, target, num_bands, *, tile_n=None):
    """Pallas implementation of the SAD module's forward pass.

    Returns per-spectrum angles with shape (N, 1, 1), N = inp.size // num_bands.
    """
    assert inp.shape == target.shape, "inp and target must have the same shape"
    b = int(num_bands)
    total = math.prod(inp.shape)
    assert total % b == 0, "total element count must be divisible by num_bands"
    n = total // b

    # Free metadata reshape (inputs are contiguous): no HBM transpose/copy.
    x = jnp.reshape(inp, (n, b))
    t = jnp.reshape(target, (n, b))

    if tile_n is None:
        # ~6 MiB of f32 working data per input tile.  VMEM lane-pads the band
        # axis to a multiple of 128, so budget with the padded width.
        padded_b = _round_up(b, 128)
        target_bytes = 6 * 1024 * 1024
        tile_n = max(128, ((target_bytes // (padded_b * 4)) // 128) * 128)
        # Keep >= 2 grid steps when possible so both v7x TensorCores get work.
        cap = max(128, _round_up(pl.cdiv(n, 2), 128))
        tile_n = min(tile_n, cap)

    tile_n = max(128, (int(tile_n) // 128) * 128)
    tile_n = min(tile_n, _round_up(n, 128))

    grid = (pl.cdiv(n, tile_n),)

    cos = pl.pallas_call(
        _sad_cos_kernel,
        out_shape=jax.ShapeDtypeStruct((n, 1), jnp.float32),
        grid_spec=pltpu.PrefetchScalarGridSpec(
            num_scalar_prefetch=0,
            grid=grid,
            in_specs=[
                pl.BlockSpec((tile_n, b), lambda i: (i, 0)),
                pl.BlockSpec((tile_n, b), lambda i: (i, 0)),
            ],
            out_specs=pl.BlockSpec((tile_n, 1), lambda i: (i, 0)),
        ),
        compiler_params=pltpu.CompilerParams(
            dimension_semantics=("parallel",),
            # 2 inputs x 2 pipeline buffers x ~6 MiB + temporaries stays well
            # under 48 MiB; safe on v7x (64 MiB VMEM) and v5e/v6e (128 MiB).
            vmem_limit_bytes=48 * 1024 * 1024,
        ),
    )(x, t)

    # TODO(synk): torch.acos has no Pallas/Mosaic TPU lowering (lax.acos is not
    # supported in-kernel); the final pointwise arccos is applied outside the
    # kernel on the already-reduced (N,)-sized cosine vector (negligible work).
    angle = jnp.arccos(cos[:, 0])
    return jnp.reshape(angle, (n, 1, 1))


def _sad_ref(inp, target, num_bands):
    x = jnp.reshape(inp, (-1, num_bands)).astype(jnp.float32)
    t = jnp.reshape(target, (-1, num_bands)).astype(jnp.float32)
    xn = jnp.sqrt(jnp.sum(x * x, axis=-1, keepdims=True))
    tn = jnp.sqrt(jnp.sum(t * t, axis=-1, keepdims=True))
    s = jnp.sum(x * t, axis=-1, keepdims=True)
    return jnp.arccos(s / (xn * tn))[:, :, None]


if __name__ == "__main__":
    num_bands = 32
    key = jax.random.PRNGKey(0)
    k1, k2, k3, k4 = jax.random.split(key, 4)

    # N = 256 spectra of 32 bands (strictly positive, typical hyperspectral use).
    shape = (4, 64, num_bands)
    inp = jax.random.uniform(k1, shape, jnp.float32, 0.1, 1.0)
    tar = jax.random.uniform(k2, shape, jnp.float32, 0.1, 1.0)

    ref = _sad_ref(inp, tar, num_bands)
    out = jax.block_until_ready(sad(inp, tar, num_bands))
    assert out.shape == ref.shape, (out.shape, ref.shape)
    assert jnp.allclose(out, ref, rtol=1e-4, atol=1e-4), (
        out.ravel()[:4], ref.ravel()[:4])

    # Ragged multi-step grid: N = 210 spectra with a 128-wide tile.
    shape2 = (3, 70, num_bands)
    inp2 = jax.random.uniform(k3, shape2, jnp.float32, 0.1, 1.0)
    tar2 = jax.random.uniform(k4, shape2, jnp.float32, 0.1, 1.0)
    ref2 = _sad_ref(inp2, tar2, num_bands)
    out2 = jax.block_until_ready(sad(inp2, tar2, num_bands, tile_n=128))
    assert out2.shape == ref2.shape, (out2.shape, ref2.shape)
    assert jnp.allclose(out2, ref2, rtol=1e-4, atol=1e-4)

    print("KERNEL_OK")
</pallas_src>

<mosaic_0001>
module attributes {stable_mosaic.version = 11 : i64} {
  func.func @_sad_cos_kernel(%arg0: i32, %arg1: memref<128x32xf32, #tpu.memory_space<vmem>>, %arg2: memref<128x32xf32, #tpu.memory_space<vmem>>, %arg3: memref<128x1xf32, #tpu.memory_space<vmem>>) attributes {dimension_semantics = [#tpu.dimension_semantics<parallel>], iteration_bounds = array<i64: 2>, scalar_prefetch = 0 : i64, scratch_operands = 0 : i64, tpu.core_type = #tpu.core_type<tc>, window_params = [{transform_indices = @transform_0, window_bounds = array<i64: 128, 32>}, {transform_indices = @transform_1, window_bounds = array<i64: 128, 32>}, {transform_indices = @transform_2, window_bounds = array<i64: 128, 1>}]} {
    %c0 = arith.constant 0 : index
    %c0_0 = arith.constant 0 : index
    %0 = vector.load %arg1[%c0, %c0_0] : memref<128x32xf32, #tpu.memory_space<vmem>>, vector<128x32xf32>
    %c0_1 = arith.constant 0 : index
    %c0_2 = arith.constant 0 : index
    %1 = vector.load %arg2[%c0_1, %c0_2] : memref<128x32xf32, #tpu.memory_space<vmem>>, vector<128x32xf32>
    %2 = arith.mulf %0, %0 : vector<128x32xf32>
    %cst = arith.constant dense<0.000000e+00> : vector<128xf32>
    %3 = vector.multi_reduction <add>, %2, %cst [1] : vector<128x32xf32> to vector<128xf32>
    %4 = vector.shape_cast %3 : vector<128xf32> to vector<128x1xf32>
    %5 = arith.mulf %1, %1 : vector<128x32xf32>
    %cst_3 = arith.constant dense<0.000000e+00> : vector<128xf32>
    %6 = vector.multi_reduction <add>, %5, %cst_3 [1] : vector<128x32xf32> to vector<128xf32>
    %7 = vector.shape_cast %6 : vector<128xf32> to vector<128x1xf32>
    %8 = arith.mulf %0, %1 : vector<128x32xf32>
    %cst_4 = arith.constant dense<0.000000e+00> : vector<128xf32>
    %9 = vector.multi_reduction <add>, %8, %cst_4 [1] : vector<128x32xf32> to vector<128xf32>
    %10 = vector.shape_cast %9 : vector<128xf32> to vector<128x1xf32>
    %11 = arith.mulf %4, %7 : vector<128x1xf32>
    %12 = math.rsqrt %11 : vector<128x1xf32>
    %13 = arith.mulf %10, %12 : vector<128x1xf32>
    %cst_5 = arith.constant -1.000000e+00 : f32
    %cst_6 = arith.constant 1.000000e+00 : f32
    %14 = vector.broadcast %cst_5 : f32 to vector<128x1xf32>
    %15 = arith.maximumf %14, %13 : vector<128x1xf32>
    %16 = vector.broadcast %cst_6 : f32 to vector<128x1xf32>
    %17 = arith.minimumf %16, %15 : vector<128x1xf32>
    %c0_7 = arith.constant 0 : index
    %c0_8 = arith.constant 0 : index
    %18 = vector.load %arg3[%c0_7, %c0_8] : memref<128x1xf32, #tpu.memory_space<vmem>>, vector<128x1xf32>
    tpu.vector_store %arg3[%c0_7, %c0_8], %17 {strides = array<i32>} : memref<128x1xf32, #tpu.memory_space<vmem>>, vector<128x1xf32>,
    return
  }
  func.func @transform_0(%arg0: i32) -> (i32, i32) {
    %c0_i32 = arith.constant 0 : i32
    %c0_i32_0 = arith.constant 0 : i32
    return %arg0, %c0_i32 : i32, i32
  }
  func.func @transform_1(%arg0: i32) -> (i32, i32) {
    %c0_i32 = arith.constant 0 : i32
    %c0_i32_0 = arith.constant 0 : i32
    return %arg0, %c0_i32 : i32, i32
  }
  func.func @transform_2(%arg0: i32) -> (i32, i32) {
    %c0_i32 = arith.constant 0 : i32
    %c0_i32_0 = arith.constant 0 : i32
    return %arg0, %c0_i32 : i32, i32
  }
}

</mosaic_0001>

<llo_original>
// kernel: tpu_custom_call.1
$region0: #{tpu_custom_call.1}
  #allocation0 [shape = 'u32[]', space=smem, size = 0x4, offset = 0x4, fixed_abs, tag = 'smem constant byte address 0x4 - core index']
  #allocation1 [shape = 'u32[72,128]{1,0:T(1,128)}', space=vmem, size = 0x9000, scoped, tag = 'internal scratch']
  %s0 = inlined_call_operand.vmem [shape: f32[256,32], index: 0, kind: input, shape index: {}]
  %s1 = inlined_call_operand.vmem [shape: f32[256,32], index: 1, kind: input, shape index: {}]
  %s2 = inlined_call_operand.vmem [shape: f32[256,1], index: 2, kind: output, shape index: {}]
  %s3 = sld [smem:[#allocation0]]
  $region41: #{tpu_custom_call.1} parent=0
    _
  %s5 = ssub.s32 1, %s3
  %s6 = scalar_select 0, %s5, %s3
  loop: start=0, step=1, limit=4
  $region2: #{tpu_custom_call.1} parent=0 // loop_pre_header
    _
  $region3: #{tpu_custom_call.1} parent=0 // loop_header
    %s8 = sphi 0, %s12
    %p9 = scmp.ge.s32.totalorder %s8, 4
    %s18 = sphi 0, %s20
    %s21 = sphi 0, %s18
    %s22 = sphi 0, %s21
    %s38 = sphi 0, %s22
    %s44 = sphi 0, %s46
    %s47 = sphi 0, %s44
    %s48 = sphi 0, %s47
    %s64 = sphi 0, %s48
    %s70 = sphi 0, %s72
    %s73 = sphi 0, %s70
    %s74 = sphi 0, %s73
    %s90 = sphi 0, %s74
  $region4: #{tpu_custom_call.1} parent=0 // loop_header_branch
    %11 = sbr.rel (%p9) target = $region8
  $region5: #{tpu_custom_call.1} parent=0 // loop_body
    %s13 = ssub.s32 %s8, 1
    %s14 = ssub.s32 %s8, 2
    %s15 = sadd.s32 %s8, 1
    %s16 = ssub.s32 %s8, %s15
    %p17 = scmp.eq.s32.totalorder %s16, 0
    %s19 = sadd.s32 %s18, 1
    %s20 = scalar_select %p17, %s18, %s19
    %p23 = pneg %p17
    %p24 = scmp.eq.s32.totalorder %s8, 1
    %p25 = por %p23, %p24
    %p26 = scmp.ne.s32.totalorder %s18, %s21
    %p27 = scmp.eq.s32.totalorder %s8, 0
    %p28 = por %p26, %p27
    %p29 = scmp.ne.s32.totalorder %s18, %s21
    %p30 = scmp.eq.s32.totalorder %s13, 1
    %p31 = por %p29, %p30
    %p32 = scmp.ne.s32.totalorder %s21, %s22
    %p33 = scmp.eq.s32.totalorder %s13, 0
    %p34 = por %p32, %p33
    %p35 = scmp.ne.s32.totalorder %s21, %s22
    %p36 = scmp.eq.s32.totalorder %s14, 1
    %p37 = por %p35, %p36
    %p39 = scmp.ne.s32.totalorder %s22, %s38
    %p40 = scmp.eq.s32.totalorder %s14, 0
    %p41 = por %p39, %p40
    %s42 = ssub.s32 %s8, %s15
    %p43 = scmp.eq.s32.totalorder %s42, 0
    %s45 = sadd.s32 %s44, 1
    %s46 = scalar_select %p43, %s44, %s45
    %p49 = pneg %p43
    %p50 = scmp.eq.s32.totalorder %s8, 1
    %p51 = por %p49, %p50
    %p52 = scmp.ne.s32.totalorder %s44, %s47
    %p53 = scmp.eq.s32.totalorder %s8, 0
    %p54 = por %p52, %p53
    %p55 = scmp.ne.s32.totalorder %s44, %s47
    %p56 = scmp.eq.s32.totalorder %s13, 1
    %p57 = por %p55, %p56
    %p58 = scmp.ne.s32.totalorder %s47, %s48
    %p59 = scmp.eq.s32.totalorder %s13, 0
    %p60 = por %p58, %p59
    %p61 = scmp.ne.s32.totalorder %s47, %s48
    %p62 = scmp.eq.s32.totalorder %s14, 1
    %p63 = por %p61, %p62
    %p65 = scmp.ne.s32.totalorder %s48, %s64
    %p66 = scmp.eq.s32.totalorder %s14, 0
    %p67 = por %p65, %p66
    %s68 = ssub.s32 %s8, %s15
    %p69 = scmp.eq.s32.totalorder %s68, 0
    %s71 = sadd.s32 %s70, 1
    %s72 = scalar_select %p69, %s70, %s71
    %p75 = pneg %p69
    %p76 = scmp.eq.s32.totalorder %s8, 1
    %p77 = por %p75, %p76
    %p78 = scmp.ne.s32.totalorder %s70, %s73
    %p79 = scmp.eq.s32.totalorder %s8, 0
    %p80 = por %p78, %p79
    %p81 = scmp.ne.s32.totalorder %s70, %s73
    %p82 = scmp.eq.s32.totalorder %s13, 1
    %p83 = por %p81, %p82
    %p84 = scmp.ne.s32.totalorder %s73, %s74
    %p85 = scmp.eq.s32.totalorder %s13, 0
    %p86 = por %p84, %p85
    %p87 = scmp.ne.s32.totalorder %s73, %s74
    %p88 = scmp.eq.s32.totalorder %s14, 1
    %p89 = por %p87, %p88
    %p91 = scmp.ne.s32.totalorder %s74, %s90
    %p92 = scmp.eq.s32.totalorder %s14, 0
    %p93 = por %p91, %p92
    %p94 = scmp.le.s32.totalorder 1, %s8
    %p95 = scmp.lt.s32.totalorder %s8, 3
    %p96 = pnand %p94, %p95
    %p97 = pneg %p96
    // Predicated region
    $region9: #{tpu_custom_call.1} parent=5 // pred_check
      _
    $region10: #{tpu_custom_call.1} parent=5 // pred_check_branch
      %99 = sbr.rel (%p96) target = $region12
    $region11: #{tpu_custom_call.1} parent=5 // pred_region
      %s100 = ssub.s32 %s8, 1
    $region12: #{tpu_custom_call.1} parent=5 // pred_fallthru
      _
    %p101 = scmp.lt.s32.totalorder %s8, 2
    // Predicated region
    $region13: #{tpu_custom_call.1} parent=5 // pred_check
      %p102 = pneg %p101
    $region14: #{tpu_custom_call.1} parent=5 // pred_check_branch
      %104 = sbr.rel (%p102) target = $region16
    $region15: #{tpu_custom_call.1} parent=5 // pred_region
      // Predicated region
      $region17: #{tpu_custom_call.1} parent=15 // pred_check
        %p105 = pneg %p28
      $region18: #{tpu_custom_call.1} parent=15 // pred_check_branch
        %107 = sbr.rel (%p105) target = $region20
      $region19: #{tpu_custom_call.1} parent=15 // pred_region
        %s108 = smul.u32 16, %s8
        %p109 = scmp.lt.s32.totalorder %s108, 31
        %s110 = scalar_select %p109, %s108, 31
        %s111 = smul.addr %s110, 8
        %s112 = scalar_lea.vmem %s0, %s111
        %s113 = smul.u32 16, %s8
      $region20: #{tpu_custom_call.1} parent=15 // pred_fallthru
        _
      // Predicated region
      $region21: #{tpu_custom_call.1} parent=15 // pred_check
        %p114 = pneg %p54
      $region22: #{tpu_custom_call.1} parent=15 // pred_check_branch
        %116 = sbr.rel (%p114) target = $region24
      $region23: #{tpu_custom_call.1} parent=15 // pred_region
        %s117 = smul.u32 16, %s8
        %p118 = scmp.lt.s32.totalorder %s117, 31
        %s119 = scalar_select %p118, %s117, 31
        %s120 = smul.addr %s119, 8
        %s121 = scalar_lea.vmem %s1, %s120
        %s122 = smul.u32 16, %s8
      $region24: #{tpu_custom_call.1} parent=15 // pred_fallthru
        _
    $region16: #{tpu_custom_call.1} parent=5 // pred_fallthru
      _
    %p123 = scmp.le.s32.totalorder 1, %s8
    %p124 = scmp.lt.s32.totalorder %s8, 3
    %p125 = pnand %p123, %p124
    %p126 = pneg %p125
    // Predicated region
    $region25: #{tpu_custom_call.1} parent=5 // pred_check
      _
    $region26: #{tpu_custom_call.1} parent=5 // pred_check_branch
      %128 = sbr.rel (%p125) target = $region28
    $region27: #{tpu_custom_call.1} parent=5 // pred_region
      %s129 = ssub.s32 %s8, 1
      %s130 = smul.u32 16, %s13
      %p131 = scmp.lt.s32.totalorder %s130, 31
      %s132 = scalar_select %p131, %s130, 31
      %s133 = smul.addr %s132, 8
      %s134 = scalar_lea.vmem %s0, %s133
      %p135 = pneg %p34
      %p136 = pneg %p31
      %s137 = smul.u32 16, %s13
      %p138 = scmp.lt.s32.totalorder %s137, 31
      %s139 = scalar_select %p138, %s137, 31
      %s140 = smul.addr %s139, 8
      %s141 = scalar_lea.vmem %s1, %s140
      %p142 = pneg %p60
      %p143 = pneg %p57
      %p144 = pneg %p86
      %p145 = pneg %p83
      %s146 = smul.u32 16, %s13
      %p147 = scmp.lt.s32.totalorder %s146, 31
      %s148 = scalar_select %p147, %s146, 31
      %s149 = smul.addr %s148, 8
      %s150 = scalar_lea.vmem %s2, %s149
      %s151 = smul.u32 16, %s13
      %p152 = scmp.lt.s32.totalorder %s151, 31
      %s153 = scalar_select %p152, %s151, 31
      %s154 = smul.addr %s153, 8
      %s155 = scalar_lea.vmem %s0, %s154
      %s156 = smul.u32 16, %s13
      %s157 = smul.u32 16, %s13
      %p158 = scmp.lt.s32.totalorder %s157, 31
      %s159 = scalar_select %p158, %s157, 31
      %s160 = smul.addr %s159, 8
      %s161 = scalar_lea.vmem %s1, %s160
      %s162 = smul.u32 16, %s13
      %s163 = smul.u32 16, %s13
      %p164 = scmp.lt.s32.totalorder %s163, 31
      %s165 = scalar_select %p164, %s163, 31
      %s166 = smul.addr %s165, 8
      %s167 = scalar_lea.vmem %s2, %s166
      %s168 = smul.u32 16, %s13
      %v169 = vld [vmem:[%s155] sm:$0xff]
      %v170 = vld [vmem:[%s155 + $0x8] sm:$0xff]
      %v171 = vld [vmem:[%s155 + $0x10] sm:$0xff]
      %v172 = vld [vmem:[%s155 + $0x18] sm:$0xff]
      %v173 = vld [vmem:[%s155 + $0x20] sm:$0xff]
      %v174 = vld [vmem:[%s155 + $0x28] sm:$0xff]
      %v175 = vld [vmem:[%s155 + $0x30] sm:$0xff]
      %v176 = vld [vmem:[%s155 + $0x38] sm:$0xff]
      %v177 = vld [vmem:[%s155 + $0x40] sm:$0xff]
      %v178 = vld [vmem:[%s155 + $0x48] sm:$0xff]
      %v179 = vld [vmem:[%s155 + $0x50] sm:$0xff]
      %v180 = vld [vmem:[%s155 + $0x58] sm:$0xff]
      %v181 = vld [vmem:[%s155 + $0x60] sm:$0xff]
      %v182 = vld [vmem:[%s155 + $0x68] sm:$0xff]
      %v183 = vld [vmem:[%s155 + $0x70] sm:$0xff]
      %v184 = vld [vmem:[%s155 + $0x78] sm:$0xff]
      %v185 = vld [vmem:[%s161] sm:$0xff]
      %v186 = vld [vmem:[%s161 + $0x8] sm:$0xff]
      %v187 = vld [vmem:[%s161 + $0x10] sm:$0xff]
      %v188 = vld [vmem:[%s161 + $0x18] sm:$0xff]
      %v189 = vld [vmem:[%s161 + $0x20] sm:$0xff]
      %v190 = vld [vmem:[%s161 + $0x28] sm:$0xff]
      %v191 = vld [vmem:[%s161 + $0x30] sm:$0xff]
      %v192 = vld [vmem:[%s161 + $0x38] sm:$0xff]
      %v193 = vld [vmem:[%s161 + $0x40] sm:$0xff]
      %v194 = vld [vmem:[%s161 + $0x48] sm:$0xff]
      %v195 = vld [vmem:[%s161 + $0x50] sm:$0xff]
      %v196 = vld [vmem:[%s161 + $0x58] sm:$0xff]
      %v197 = vld [vmem:[%s161 + $0x60] sm:$0xff]
      %v198 = vld [vmem:[%s161 + $0x68] sm:$0xff]
      %v199 = vld [vmem:[%s161 + $0x70] sm:$0xff]
      %v200 = vld [vmem:[%s161 + $0x78] sm:$0xff]
      %v201 = vmul.f32 %v169, %v169
      %v202 = vmul.f32 %v170, %v170
      %v203 = vmul.f32 %v171, %v171
      %v204 = vmul.f32 %v172, %v172
      %v205 = vmul.f32 %v173, %v173
      %v206 = vmul.f32 %v174, %v174
      %v207 = vmul.f32 %v175, %v175
      %v208 = vmul.f32 %v176, %v176
      %v209 = vmul.f32 %v177, %v177
      %v210 = vmul.f32 %v178, %v178
      %v211 = vmul.f32 %v179, %v179
      %v212 = vmul.f32 %v180, %v180
      %v213 = vmul.f32 %v181, %v181
      %v214 = vmul.f32 %v182, %v182
      %v215 = vmul.f32 %v183, %v183
      %v216 = vmul.f32 %v184, %v184
      %vm217 = vcmask 261120
      %v218 = vsel %vm217, %v201, 0.0
      %219 = vadd.xlane.f32.xlu0 %v218
      %v220 = vpop.xlane.xlu0 %219
      %v221 = vsel %vm217, %v202, 0.0
      %222 = vadd.xlane.f32.xlu0 %v221
      %v223 = vpop.xlane.xlu0 %222
      %v224 = vsel %vm217, %v203, 0.0
      %225 = vadd.xlane.f32.xlu0 %v224
      %v226 = vpop.xlane.xlu0 %225
      %v227 = vsel %vm217, %v204, 0.0
      %228 = vadd.xlane.f32.xlu0 %v227
      %v229 = vpop.xlane.xlu0 %228
      %v230 = vsel %vm217, %v205, 0.0
      %231 = vadd.xlane.f32.xlu0 %v230
      %v232 = vpop.xlane.xlu0 %231
      %v233 = vsel %vm217, %v206, 0.0
      %234 = vadd.xlane.f32.xlu0 %v233
      %v235 = vpop.xlane.xlu0 %234
      %v236 = vsel %vm217, %v207, 0.0
      %237 = vadd.xlane.f32.xlu0 %v236
      %v238 = vpop.xlane.xlu0 %237
      %v239 = vsel %vm217, %v208, 0.0
      %240 = vadd.xlane.f32.xlu0 %v239
      %v241 = vpop.xlane.xlu0 %240
      %v242 = vsel %vm217, %v209, 0.0
      %243 = vadd.xlane.f32.xlu0 %v242
      %v244 = vpop.xlane.xlu0 %243
      %v245 = vsel %vm217, %v210, 0.0
      %246 = vadd.xlane.f32.xlu0 %v245
      %v247 = vpop.xlane.xlu0 %246
      %v248 = vsel %vm217, %v211, 0.0
      %249 = vadd.xlane.f32.xlu0 %v248
      %v250 = vpop.xlane.xlu0 %249
      %v251 = vsel %vm217, %v212, 0.0
      %252 = vadd.xlane.f32.xlu0 %v251
      %v253 = vpop.xlane.xlu0 %252
      %v254 = vsel %vm217, %v213, 0.0
      %255 = vadd.xlane.f32.xlu0 %v254
      %v256 = vpop.xlane.xlu0 %255
      %v257 = vsel %vm217, %v214, 0.0
      %258 = vadd.xlane.f32.xlu0 %v257
      %v259 = vpop.xlane.xlu0 %258
      %v260 = vsel %vm217, %v215, 0.0
      %261 = vadd.xlane.f32.xlu0 %v260
      %v262 = vpop.xlane.xlu0 %261
      %v263 = vsel %vm217, %v216, 0.0
      %264 = vadd.xlane.f32.xlu0 %v263
      %v265 = vpop.xlane.xlu0 %264
      %v266 = vmul.f32 %v185, %v185
      %v267 = vmul.f32 %v186, %v186
      %v268 = vmul.f32 %v187, %v187
      %v269 = vmul.f32 %v188, %v188
      %v270 = vmul.f32 %v189, %v189
      %v271 = vmul.f32 %v190, %v190
      %v272 = vmul.f32 %v191, %v191
      %v273 = vmul.f32 %v192, %v192
      %v274 = vmul.f32 %v193, %v193
      %v275 = vmul.f32 %v194, %v194
      %v276 = vmul.f32 %v195, %v195
      %v277 = vmul.f32 %v196, %v196
      %v278 = vmul.f32 %v197, %v197
      %v279 = vmul.f32 %v198, %v198
      %v280 = vmul.f32 %v199, %v199
      %v281 = vmul.f32 %v200, %v200
      %v282 = vsel %vm217, %v266, 0.0
      %283 = vadd.xlane.f32.xlu0 %v282
      %v284 = vpop.xlane.xlu0 %283
      %v285 = vsel %vm217, %v267, 0.0
      %286 = vadd.xlane.f32.xlu0 %v285
      %v287 = vpop.xlane.xlu0 %286
      %v288 = vsel %vm217, %v268, 0.0
      %289 = vadd.xlane.f32.xlu0 %v288
      %v290 = vpop.xlane.xlu0 %289
      %v291 = vsel %vm217, %v269, 0.0
      %292 = vadd.xlane.f32.xlu0 %v291
      %v293 = vpop.xlane.xlu0 %292
      %v294 = vsel %vm217, %v270, 0.0
      %295 = vadd.xlane.f32.xlu0 %v294
      %v296 = vpop.xlane.xlu0 %295
      %v297 = vsel %vm217, %v271, 0.0
      %298 = vadd.xlane.f32.xlu0 %v297
      %v299 = vpop.xlane.xlu0 %298
      %v300 = vsel %vm217, %v272, 0.0
      %301 = vadd.xlane.f32.xlu0 %v300
      %v302 = vpop.xlane.xlu0 %301
      %v303 = vsel %vm217, %v273, 0.0
      %304 = vadd.xlane.f32.xlu0 %v303
      %v305 = vpop.xlane.xlu0 %304
      %v306 = vsel %vm217, %v274, 0.0
      %307 = vadd.xlane.f32.xlu0 %v306
      %v308 = vpop.xlane.xlu0 %307
      %v309 = vsel %vm217, %v275, 0.0
      %310 = vadd.xlane.f32.xlu0 %v309
      %v311 = vpop.xlane.xlu0 %310
      %v312 = vsel %vm217, %v276, 0.0
      %313 = vadd.xlane.f32.xlu0 %v312
      %v314 = vpop.xlane.xlu0 %313
      %v315 = vsel %vm217, %v277, 0.0
      %316 = vadd.xlane.f32.xlu0 %v315
      %v317 = vpop.xlane.xlu0 %316
      %v318 = vsel %vm217, %v278, 0.0
      %319 = vadd.xlane.f32.xlu0 %v318
      %v320 = vpop.xlane.xlu0 %319
      %v321 = vsel %vm217, %v279, 0.0
      %322 = vadd.xlane.f32.xlu0 %v321
      %v323 = vpop.xlane.xlu0 %322
      %v324 = vsel %vm217, %v280, 0.0
      %325 = vadd.xlane.f32.xlu0 %v324
      %v326 = vpop.xlane.xlu0 %325
      %v327 = vsel %vm217, %v281, 0.0
      %328 = vadd.xlane.f32.xlu0 %v327
      %v329 = vpop.xlane.xlu0 %328
      %v330 = vmul.f32 %v169, %v185
      %v331 = vmul.f32 %v170, %v186
      %v332 = vmul.f32 %v171, %v187
      %v333 = vmul.f32 %v172, %v188
      %v334 = vmul.f32 %v173, %v189
      %v335 = vmul.f32 %v174, %v190
      %v336 = vmul.f32 %v175, %v191
      %v337 = vmul.f32 %v176, %v192
      %v338 = vmul.f32 %v177, %v193
      %v339 = vmul.f32 %v178, %v194
      %v340 = vmul.f32 %v179, %v195
      %v341 = vmul.f32 %v180, %v196
      %v342 = vmul.f32 %v181, %v197
      %v343 = vmul.f32 %v182, %v198
      %v344 = vmul.f32 %v183, %v199
      %v345 = vmul.f32 %v184, %v200
      %v346 = vsel %vm217, %v330, 0.0
      %347 = vadd.xlane.f32.xlu0 %v346
      %v348 = vpop.xlane.xlu0 %347
      %v349 = vsel %vm217, %v331, 0.0
      %350 = vadd.xlane.f32.xlu0 %v349
      %v351 = vpop.xlane.xlu0 %350
      %v352 = vsel %vm217, %v332, 0.0
      %353 = vadd.xlane.f32.xlu0 %v352
      %v354 = vpop.xlane.xlu0 %353
      %v355 = vsel %vm217, %v333, 0.0
      %356 = vadd.xlane.f32.xlu0 %v355
      %v357 = vpop.xlane.xlu0 %356
      %v358 = vsel %vm217, %v334, 0.0
      %359 = vadd.xlane.f32.xlu0 %v358
      %v360 = vpop.xlane.xlu0 %359
      %v361 = vsel %vm217, %v335, 0.0
      %362 = vadd.xlane.f32.xlu0 %v361
      %v363 = vpop.xlane.xlu0 %362
      %v364 = vsel %vm217, %v336, 0.0
      %365 = vadd.xlane.f32.xlu0 %v364
      %v366 = vpop.xlane.xlu0 %365
      %v367 = vsel %vm217, %v337, 0.0
      %368 = vadd.xlane.f32.xlu0 %v367
      %v369 = vpop.xlane.xlu0 %368
      %v370 = vsel %vm217, %v338, 0.0
      %371 = vadd.xlane.f32.xlu0 %v370
      %v372 = vpop.xlane.xlu0 %371
      %v373 = vsel %vm217, %v339, 0.0
      %374 = vadd.xlane.f32.xlu0 %v373
      %v375 = vpop.xlane.xlu0 %374
      %v376 = vsel %vm217, %v340, 0.0
      %377 = vadd.xlane.f32.xlu0 %v376
      %v378 = vpop.xlane.xlu0 %377
      %v379 = vsel %vm217, %v341, 0.0
      %380 = vadd.xlane.f32.xlu0 %v379
      %v381 = vpop.xlane.xlu0 %380
      %v382 = vsel %vm217, %v342, 0.0
      %383 = vadd.xlane.f32.xlu0 %v382
      %v384 = vpop.xlane.xlu0 %383
      %v385 = vsel %vm217, %v343, 0.0
      %386 = vadd.xlane.f32.xlu0 %v385
      %v387 = vpop.xlane.xlu0 %386
      %v388 = vsel %vm217, %v344, 0.0
      %389 = vadd.xlane.f32.xlu0 %v388
      %v390 = vpop.xlane.xlu0 %389
      %v391 = vsel %vm217, %v345, 0.0
      %392 = vadd.xlane.f32.xlu0 %v391
      %v393 = vpop.xlane.xlu0 %392
      %v394 = vmul.f32 %v220, %v284
      %v395 = vmul.f32 %v223, %v287
      %v396 = vmul.f32 %v226, %v290
      %v397 = vmul.f32 %v229, %v293
      %v398 = vmul.f32 %v232, %v296
      %v399 = vmul.f32 %v235, %v299
      %v400 = vmul.f32 %v238, %v302
      %v401 = vmul.f32 %v241, %v305
      %v402 = vmul.f32 %v244, %v308
      %v403 = vmul.f32 %v247, %v311
      %v404 = vmul.f32 %v250, %v314
      %v405 = vmul.f32 %v253, %v317
      %v406 = vmul.f32 %v256, %v320
      %v407 = vmul.f32 %v259, %v323
      %v408 = vmul.f32 %v262, %v326
      %v409 = vmul.f32 %v265, %v329
      %v410 = vrsqrt.pop %v394
      %v411 = vmul.f32 %v410, %v394
      %v412 = vmul.f32 %v411, %v410
      %v413 = vmul.f32 0.5, %v412
      %v414 = vsub.f32 1.5, %v413
      %v415 = vmul.f32 %v410, %v414
      %vm416 = vweird.f32 %v394
      %vm417 = vweird.f32 %v410
      %vm418 = vmor %vm416, %vm417
      %v419 = vsel %vm418, %v410, %v415
      %v420 = vrsqrt.pop %v395
      %v421 = vmul.f32 %v420, %v395
      %v422 = vmul.f32 %v421, %v420
      %v423 = vmul.f32 0.5, %v422
      %v424 = vsub.f32 1.5, %v423
      %v425 = vmul.f32 %v420, %v424
      %vm426 = vweird.f32 %v395
      %vm427 = vweird.f32 %v420
      %vm428 = vmor %vm426, %vm427
      %v429 = vsel %vm428, %v420, %v425
      %v430 = vrsqrt.pop %v396
      %v431 = vmul.f32 %v430, %v396
      %v432 = vmul.f32 %v431, %v430
      %v433 = vmul.f32 0.5, %v432
      %v434 = vsub.f32 1.5, %v433
      %v435 = vmul.f32 %v430, %v434
      %vm436 = vweird.f32 %v396
      %vm437 = vweird.f32 %v430
      %vm438 = vmor %vm436, %vm437
      %v439 = vsel %vm438, %v430, %v435
      %v440 = vrsqrt.pop %v397
      %v441 = vmul.f32 %v440, %v397
      %v442 = vmul.f32 %v441, %v440
      %v443 = vmul.f32 0.5, %v442
      %v444 = vsub.f32 1.5, %v443
      %v445 = vmul.f32 %v440, %v444
      %vm446 = vweird.f32 %v397
      %vm447 = vweird.f32 %v440
      %vm448 = vmor %vm446, %vm447
      %v449 = vsel %vm448, %v440, %v445
      %v450 = vrsqrt.pop %v398
      %v451 = vmul.f32 %v450, %v398
      %v452 = vmul.f32 %v451, %v450
      %v453 = vmul.f32 0.5, %v452
      %v454 = vsub.f32 1.5, %v453
      %v455 = vmul.f32 %v450, %v454
      %vm456 = vweird.f32 %v398
      %vm457 = vweird.f32 %v450
      %vm458 = vmor %vm456, %vm457
      %v459 = vsel %vm458, %v450, %v455
      %v460 = vrsqrt.pop %v399
      %v461 = vmul.f32 %v460, %v399
      %v462 = vmul.f32 %v461, %v460
      %v463 = vmul.f32 0.5, %v462
      %v464 = vsub.f32 1.5, %v463
      %v465 = vmul.f32 %v460, %v464
      %vm466 = vweird.f32 %v399
      %vm467 = vweird.f32 %v460
      %vm468 = vmor %vm466, %vm467
      %v469 = vsel %vm468, %v460, %v465
      %v470 = vrsqrt.pop %v400
      %v471 = vmul.f32 %v470, %v400
      %v472 = vmul.f32 %v471, %v470
      %v473 = vmul.f32 0.5, %v472
      %v474 = vsub.f32 1.5, %v473
      %v475 = vmul.f32 %v470, %v474
      %vm476 = vweird.f32 %v400
      %vm477 = vweird.f32 %v470
      %vm478 = vmor %vm476, %vm477
      %v479 = vsel %vm478, %v470, %v475
      %v480 = vrsqrt.pop %v401
      %v481 = vmul.f32 %v480, %v401
      %v482 = vmul.f32 %v481, %v480
      %v483 = vmul.f32 0.5, %v482
      %v484 = vsub.f32 1.5, %v483
      %v485 = vmul.f32 %v480, %v484
      %vm486 = vweird.f32 %v401
      %vm487 = vweird.f32 %v480
      %vm488 = vmor %vm486, %vm487
      %v489 = vsel %vm488, %v480, %v485
      %v490 = vrsqrt.pop %v402
      %v491 = vmul.f32 %v490, %v402
      %v492 = vmul.f32 %v491, %v490
      %v493 = vmul.f32 0.5, %v492
      %v494 = vsub.f32 1.5, %v493
      %v495 = vmul.f32 %v490, %v494
      %vm496 = vweird.f32 %v402
      %vm497 = vweird.f32 %v490
      %vm498 = vmor %vm496, %vm497
      %v499 = vsel %vm498, %v490, %v495
      %v500 = vrsqrt.pop %v403
      %v501 = vmul.f32 %v500, %v403
      %v502 = vmul.f32 %v501, %v500
      %v503 = vmul.f32 0.5, %v502
      %v504 = vsub.f32 1.5, %v503
      %v505 = vmul.f32 %v500, %v504
      %vm506 = vweird.f32 %v403
      %vm507 = vweird.f32 %v500
      %vm508 = vmor %vm506, %vm507
      %v509 = vsel %vm508, %v500, %v505
      %v510 = vrsqrt.pop %v404
      %v511 = vmul.f32 %v510, %v404
      %v512 = vmul.f32 %v511, %v510
      %v513 = vmul.f32 0.5, %v512
      %v514 = vsub.f32 1.5, %v513
      %v515 = vmul.f32 %v510, %v514
      %vm516 = vweird.f32 %v404
      %vm517 = vweird.f32 %v510
      %vm518 = vmor %vm516, %vm517
      %v519 = vsel %vm518, %v510, %v515
      %v520 = vrsqrt.pop %v405
      %v521 = vmul.f32 %v520, %v405
      %v522 = vmul.f32 %v521, %v520
      %v523 = vmul.f32 0.5, %v522
      %v524 = vsub.f32 1.5, %v523
      %v525 = vmul.f32 %v520, %v524
      %vm526 = vweird.f32 %v405
      %vm527 = vweird.f32 %v520
      %vm528 = vmor %vm526, %vm527
      %v529 = vsel %vm528, %v520, %v525
      %v530 = vrsqrt.pop %v406
      %v531 = vmul.f32 %v530, %v406
      %v532 = vmul.f32 %v531, %v530
      %v533 = vmul.f32 0.5, %v532
      %v534 = vsub.f32 1.5, %v533
      %v535 = vmul.f32 %v530, %v534
      %vm536 = vweird.f32 %v406
      %vm537 = vweird.f32 %v530
      %vm538 = vmor %vm536, %vm537
      %v539 = vsel %vm538, %v530, %v535
      %v540 = vrsqrt.pop %v407
      %v541 = vmul.f32 %v540, %v407
      %v542 = vmul.f32 %v541, %v540
      %v543 = vmul.f32 0.5, %v542
      %v544 = vsub.f32 1.5, %v543
      %v545 = vmul.f32 %v540, %v544
      %vm546 = vweird.f32 %v407
      %vm547 = vweird.f32 %v540
      %vm548 = vmor %vm546, %vm547
      %v549 = vsel %vm548, %v540, %v545
      %v550 = vrsqrt.pop %v408
      %v551 = vmul.f32 %v550, %v408
      %v552 = vmul.f32 %v551, %v550
      %v553 = vmul.f32 0.5, %v552
      %v554 = vsub.f32 1.5, %v553
      %v555 = vmul.f32 %v550, %v554
      %vm556 = vweird.f32 %v408
      %vm557 = vweird.f32 %v550
      %vm558 = vmor %vm556, %vm557
      %v559 = vsel %vm558, %v550, %v555
      %v560 = vrsqrt.pop %v409
      %v561 = vmul.f32 %v560, %v409
      %v562 = vmul.f32 %v561, %v560
      %v563 = vmul.f32 0.5, %v562
      %v564 = vsub.f32 1.5, %v563
      %v565 = vmul.f32 %v560, %v564
      %vm566 = vweird.f32 %v409
      %vm567 = vweird.f32 %v560
      %vm568 = vmor %vm566, %vm567
      %v569 = vsel %vm568, %v560, %v565
      %v570 = vmul.f32 %v348, %v419
      %v571 = vmul.f32 %v351, %v429
      %v572 = vmul.f32 %v354, %v439
      %v573 = vmul.f32 %v357, %v449
      %v574 = vmul.f32 %v360, %v459
      %v575 = vmul.f32 %v363, %v469
      %v576 = vmul.f32 %v366, %v479
      %v577 = vmul.f32 %v369, %v489
      %v578 = vmul.f32 %v372, %v499
      %v579 = vmul.f32 %v375, %v509
      %v580 = vmul.f32 %v378, %v519
      %v581 = vmul.f32 %v381, %v529
      %v582 = vmul.f32 %v384, %v539
      %v583 = vmul.f32 %v387, %v549
      %v584 = vmul.f32 %v390, %v559
      %v585 = vmul.f32 %v393, %v569
      %v586 = vmax.f32 %v570, -1.0
      %v587 = vmax.f32 %v571, -1.0
      %v588 = vmax.f32 %v572, -1.0
      %v589 = vmax.f32 %v573, -1.0
      %v590 = vmax.f32 %v574, -1.0
      %v591 = vmax.f32 %v575, -1.0
      %v592 = vmax.f32 %v576, -1.0
      %v593 = vmax.f32 %v577, -1.0
      %v594 = vmax.f32 %v578, -1.0
      %v595 = vmax.f32 %v579, -1.0
      %v596 = vmax.f32 %v580, -1.0
      %v597 = vmax.f32 %v581, -1.0
      %v598 = vmax.f32 %v582, -1.0
      %v599 = vmax.f32 %v583, -1.0
      %v600 = vmax.f32 %v584, -1.0
      %v601 = vmax.f32 %v585, -1.0
      %v602 = vmin.f32 %v586, 1.0
      %v603 = vmin.f32 %v587, 1.0
      %v604 = vmin.f32 %v588, 1.0
      %v605 = vmin.f32 %v589, 1.0
      %v606 = vmin.f32 %v590, 1.0
      %v607 = vmin.f32 %v591, 1.0
      %v608 = vmin.f32 %v592, 1.0
      %v609 = vmin.f32 %v593, 1.0
      %v610 = vmin.f32 %v594, 1.0
      %v611 = vmin.f32 %v595, 1.0
      %v612 = vmin.f32 %v596, 1.0
      %v613 = vmin.f32 %v597, 1.0
      %v614 = vmin.f32 %v598, 1.0
      %v615 = vmin.f32 %v599, 1.0
      %v616 = vmin.f32 %v600, 1.0
      %v617 = vmin.f32 %v601, 1.0
      %vm618 = vcmask 7168
      %619 = vst.msk [vmem:[%s167] sm:$0xff] %vm618, %v602
      %620 = vst.msk [vmem:[%s167 + $0x8] sm:$0xff] %vm618, %v603
      %621 = vst.msk [vmem:[%s167 + $0x10] sm:$0xff] %vm618, %v604
      %622 = vst.msk [vmem:[%s167 + $0x18] sm:$0xff] %vm618, %v605
      %623 = vst.msk [vmem:[%s167 + $0x20] sm:$0xff] %vm618, %v606
      %624 = vst.msk [vmem:[%s167 + $0x28] sm:$0xff] %vm618, %v607
      %625 = vst.msk [vmem:[%s167 + $0x30] sm:$0xff] %vm618, %v608
      %626 = vst.msk [vmem:[%s167 + $0x38] sm:$0xff] %vm618, %v609
      %627 = vst.msk [vmem:[%s167 + $0x40] sm:$0xff] %vm618, %v610
      %628 = vst.msk [vmem:[%s167 + $0x48] sm:$0xff] %vm618, %v611
      %629 = vst.msk [vmem:[%s167 + $0x50] sm:$0xff] %vm618, %v612
      %630 = vst.msk [vmem:[%s167 + $0x58] sm:$0xff] %vm618, %v613
      %631 = vst.msk [vmem:[%s167 + $0x60] sm:$0xff] %vm618, %v614
      %632 = vst.msk [vmem:[%s167 + $0x68] sm:$0xff] %vm618, %v615
      %633 = vst.msk [vmem:[%s167 + $0x70] sm:$0xff] %vm618, %v616
      %634 = vst.msk [vmem:[%s167 + $0x78] sm:$0xff] %vm618, %v617
      %s635 = smul.u32 16, %s13
      %p636 = scmp.lt.s32.totalorder %s635, 31
      %s637 = scalar_select %p636, %s635, 31
      %s638 = smul.addr %s637, 8
      %s639 = scalar_lea.vmem %s2, %s638
      // Predicated region
      $region29: #{tpu_custom_call.1} parent=27 // pred_check
        %p640 = pneg %p83
      $region30: #{tpu_custom_call.1} parent=27 // pred_check_branch
        %642 = sbr.rel (%p640) target = $region32
      $region31: #{tpu_custom_call.1} parent=27 // pred_region
        %s643 = smul.u32 16, %s13
      $region32: #{tpu_custom_call.1} parent=27 // pred_fallthru
        _
    $region28: #{tpu_custom_call.1} parent=5 // pred_fallthru
      _
    %p644 = scmp.le.s32.totalorder 2, %s8
    // Predicated region
    $region33: #{tpu_custom_call.1} parent=5 // pred_check
      %p645 = pneg %p644
    $region34: #{tpu_custom_call.1} parent=5 // pred_check_branch
      %647 = sbr.rel (%p645) target = $region36
    $region35: #{tpu_custom_call.1} parent=5 // pred_region
      %s648 = ssub.s32 %s8, 2
      // Predicated region
      $region37: #{tpu_custom_call.1} parent=35 // pred_check
        %p649 = pneg %p89
      $region38: #{tpu_custom_call.1} parent=35 // pred_check_branch
        %651 = sbr.rel (%p649) target = $region40
      $region39: #{tpu_custom_call.1} parent=35 // pred_region
        %s652 = smul.u32 16, %s14
        %p653 = scmp.lt.s32.totalorder %s652, 31
        %s654 = scalar_select %p653, %s652, 31
        %s655 = smul.addr %s654, 8
        %s656 = scalar_lea.vmem %s2, %s655
      $region40: #{tpu_custom_call.1} parent=35 // pred_fallthru
        _
    $region36: #{tpu_custom_call.1} parent=5 // pred_fallthru
      _
  $region6: #{tpu_custom_call.1} parent=0 // loop_footer
    %s12 = sadd.s32 1, %s8
  $region7: #{tpu_custom_call.1} parent=0 // loop_footer_branch
    %7 = sbr.rel target = $region3
  $region8: #{tpu_custom_call.1} parent=0 // loop_exit
    _

</llo_original>
